<compile_context>
chip_gen: v7x
topology: tpu7x:2x2x1
jax: 0.10.0
libtpu: 0.0.40
codegen_flags: <defaults>
</compile_context>

<pallas_src>
import jax
import jax.numpy as jnp
from jax.experimental import pallas as pl
from jax.experimental.pallas import tpu as pltpu


def _round_up(x: int, m: int) -> int:
    return ((x + m - 1) // m) * m


def _actor_kernel(ma_ref, s_ref, w1_ref, w2_ref, w3_ref, b_ref, o_ref):
    """One batch tile: x -> L1+ReLU -> L2+ReLU -> L3 -> tanh * max_action."""
    a_pad = o_ref.shape[-1]                      # padded action lane width

    x = s_ref[...]                               # (TB, state_dim) f32
    b1 = b_ref[0:1, :]                           # (1, 256) f32
    b2 = b_ref[1:2, :]
    b3 = b_ref[2:3, :a_pad]                      # (1, a_pad) f32

    # Layer 1: bf16 matmul, f32 accumulate, f32 bias + ReLU.
    h1 = jnp.dot(x.astype(jnp.bfloat16), w1_ref[...],
                 preferred_element_type=jnp.float32) + b1
    h1 = jnp.maximum(h1, 0.0)

    # Layer 2.
    h2 = jnp.dot(h1.astype(jnp.bfloat16), w2_ref[...],
                 preferred_element_type=jnp.float32) + b2
    h2 = jnp.maximum(h2, 0.0)

    # Layer 3 + tanh, scaled by max_action (read from SMEM).
    a = jnp.dot(h2.astype(jnp.bfloat16), w3_ref[...],
                preferred_element_type=jnp.float32) + b3
    o_ref[...] = (ma_ref[0, 0] * jnp.tanh(a)).astype(o_ref.dtype)


def actor_forward(state, packed, action_dim, max_action, *, batch_tile=1024):
    """state: (B, state_dim) f32.  packed: dict from pack_actor_params."""
    b, state_dim = state.shape
    hidden = packed["w1"].shape[1]
    a_pad = packed["w3"].shape[1]

    # Batch tiling: multiple of 8 sublanes, capped so (2x state tile + weights
    # + activations) stays far below even v7x's 64 MiB VMEM.
    tb = min(batch_tile, _round_up(b, 8))
    b_pad = _round_up(b, tb)
    if b_pad != b:
        state = jnp.pad(state, ((0, b_pad - b), (0, 0)))

    ma = jnp.asarray(max_action, jnp.float32).reshape(1, 1)

    out = pl.pallas_call(
        _actor_kernel,
        out_shape=jax.ShapeDtypeStruct((b_pad, a_pad), jnp.float32),
        grid=(b_pad // tb,),
        in_specs=[
            # max_action scalar in SMEM (no recompile when it changes).
            pl.BlockSpec((1, 1), lambda i: (0, 0),
                         memory_space=pltpu.MemorySpace.SMEM),
            # state: tiled over the batch grid axis.
            pl.BlockSpec((tb, state_dim), lambda i: (i, 0)),
            # weights / biases: constant index_map -> VMEM-resident.
            pl.BlockSpec((state_dim, hidden), lambda i: (0, 0)),
            pl.BlockSpec((hidden, hidden), lambda i: (0, 0)),
            pl.BlockSpec((hidden, a_pad), lambda i: (0, 0)),
            pl.BlockSpec((3, hidden), lambda i: (0, 0)),
        ],
        out_specs=pl.BlockSpec((tb, a_pad), lambda i: (i, 0)),
        compiler_params=pltpu.CompilerParams(
            dimension_semantics=("parallel",)),
    )(ma, state, packed["w1"], packed["w2"], packed["w3"], packed["b"])

    return out[:b, :action_dim]


def init_actor_params(key, state_dim, action_dim, hidden=256):
    """Deterministic synthetic init (PyTorch-Linear-like ranges).
    Weights stored as (in, out) = W.T, f32."""
    ks = jax.random.split(key, 6)
    s1 = 1.0 / jnp.sqrt(state_dim)
    s2 = 1.0 / jnp.sqrt(hidden)
    return {
        "w1": jax.random.uniform(ks[0], (state_dim, hidden), jnp.float32, -s1, s1),
        "b1": jax.random.uniform(ks[1], (1, hidden), jnp.float32, -s1, s1),
        "w2": jax.random.uniform(ks[2], (hidden, hidden), jnp.float32, -s2, s2),
        "b2": jax.random.uniform(ks[3], (1, hidden), jnp.float32, -s2, s2),
        "w3": jax.random.uniform(ks[4], (hidden, action_dim), jnp.float32, -s2, s2),
        "b3": jax.random.uniform(ks[5], (1, action_dim), jnp.float32, -s2, s2),
    }


def pack_actor_params(params, lane=128):
    """One-time conversion for the kernel: bf16 weights, padded last layer,
    biases stacked into a single (3, hidden) f32 array."""
    hidden = params["w1"].shape[1]
    action_dim = params["w3"].shape[1]
    a_pad = _round_up(action_dim, lane)
    assert a_pad <= hidden, "padded action dim must fit in the bias stack"

    w3p = jnp.zeros((hidden, a_pad), jnp.float32).at[:, :action_dim].set(params["w3"])
    b = jnp.zeros((3, hidden), jnp.float32)
    b = b.at[0, :].set(params["b1"].reshape(-1))
    b = b.at[1, :].set(params["b2"].reshape(-1))
    b = b.at[2, :action_dim].set(params["b3"].reshape(-1))

    packed = {
        "w1": params["w1"].astype(jnp.bfloat16),
        "w2": params["w2"].astype(jnp.bfloat16),
        "w3": w3p.astype(jnp.bfloat16),
        "b": b,
    }
    return packed, action_dim


def actor_reference_bf16(state, packed, action_dim, max_action):
    """Pure-JAX reference of exactly the kernel's mixed-precision math."""
    w1, w2, w3, b = packed["w1"], packed["w2"], packed["w3"], packed["b"]
    a_pad = w3.shape[1]
    h1 = jnp.maximum(jnp.dot(state.astype(jnp.bfloat16), w1,
                             preferred_element_type=jnp.float32) + b[0:1, :], 0.0)
    h2 = jnp.maximum(jnp.dot(h1.astype(jnp.bfloat16), w2,
                             preferred_element_type=jnp.float32) + b[1:2, :], 0.0)
    a = jnp.dot(h2.astype(jnp.bfloat16), w3,
                preferred_element_type=jnp.float32) + b[2:3, :a_pad]
    return (jnp.float32(max_action) * jnp.tanh(a))[:, :action_dim]


def actor_reference_f32(state, params, max_action):
    """Full-precision reference of the original PyTorch module."""
    h1 = jnp.maximum(state @ params["w1"] + params["b1"], 0.0)
    h2 = jnp.maximum(h1 @ params["w2"] + params["b2"], 0.0)
    return max_action * jnp.tanh(h2 @ params["w3"] + params["b3"])


if __name__ == "__main__":
    key = jax.random.PRNGKey(0)
    k_param, k_state = jax.random.split(key)

    batch = 8
    state_dim = 17      # MuJoCo-like observation dim
    action_dim = 6
    max_action = 1.0

    params = init_actor_params(k_param, state_dim, action_dim)
    packed, a_dim = pack_actor_params(params)
    state = jax.random.normal(k_state, (batch, state_dim), jnp.float32)

    out = actor_forward(state, packed, a_dim, max_action)
    out = jax.block_until_ready(out)
    assert out.shape == (batch, action_dim)

    # Exact-math check against a pure-JAX replica of the kernel's bf16/f32 mix.
    ref_bf16 = actor_reference_bf16(state, packed, a_dim, max_action)
    assert jnp.allclose(out, ref_bf16, atol=1e-3, rtol=1e-3), \
        "mismatch vs bf16-matched reference"

    # Looser check against the original full-f32 module semantics.
    ref_f32 = actor_reference_f32(state, params, max_action)
    assert jnp.allclose(out, ref_f32, atol=5e-2, rtol=5e-2), \
        "mismatch vs f32 reference"

    print("KERNEL_OK")
</pallas_src>

<mosaic_0001>
module attributes {stable_mosaic.version = 11 : i64} {
  func.func @_actor_kernel(%arg0: i32, %arg1: memref<1x1xf32, #tpu.memory_space<smem>>, %arg2: memref<8x17xf32, #tpu.memory_space<vmem>>, %arg3: memref<17x256xbf16, #tpu.memory_space<vmem>>, %arg4: memref<256x256xbf16, #tpu.memory_space<vmem>>, %arg5: memref<256x128xbf16, #tpu.memory_space<vmem>>, %arg6: memref<3x256xf32, #tpu.memory_space<vmem>>, %arg7: memref<8x128xf32, #tpu.memory_space<vmem>>) attributes {dimension_semantics = [#tpu.dimension_semantics<parallel>], iteration_bounds = array<i64: 1>, scalar_prefetch = 0 : i64, scratch_operands = 0 : i64, tpu.core_type = #tpu.core_type<tc>, window_params = [{transform_indices = @transform_0, window_bounds = array<i64: 1, 1>}, {transform_indices = @transform_1, window_bounds = array<i64: 8, 17>}, {pipeline_mode = #tpu.pipeline_mode<synchronous>, transform_indices = @transform_2, window_bounds = array<i64: 17, 256>}, {pipeline_mode = #tpu.pipeline_mode<synchronous>, transform_indices = @transform_3, window_bounds = array<i64: 256, 256>}, {pipeline_mode = #tpu.pipeline_mode<synchronous>, transform_indices = @transform_4, window_bounds = array<i64: 256, 128>}, {pipeline_mode = #tpu.pipeline_mode<synchronous>, transform_indices = @transform_5, window_bounds = array<i64: 3, 256>}, {transform_indices = @transform_6, window_bounds = array<i64: 8, 128>}]} {
    %c0 = arith.constant 0 : index
    %c0_0 = arith.constant 0 : index
    %0 = vector.load %arg2[%c0, %c0_0] : memref<8x17xf32, #tpu.memory_space<vmem>>, vector<8x17xf32>
    %c0_1 = arith.constant 0 : index
    %c0_2 = arith.constant 0 : index
    %1 = vector.load %arg6[%c0_1, %c0_2] : memref<3x256xf32, #tpu.memory_space<vmem>>, vector<1x256xf32>
    %c1 = arith.constant 1 : index
    %c0_3 = arith.constant 0 : index
    %2 = vector.load %arg6[%c1, %c0_3] : memref<3x256xf32, #tpu.memory_space<vmem>>, vector<1x256xf32>
    %c2 = arith.constant 2 : index
    %c0_4 = arith.constant 0 : index
    %3 = vector.load %arg6[%c2, %c0_4] : memref<3x256xf32, #tpu.memory_space<vmem>>, vector<1x128xf32>
    %4 = arith.truncf %0 : vector<8x17xf32> to vector<8x17xbf16>
    %c0_5 = arith.constant 0 : index
    %c0_6 = arith.constant 0 : index
    %5 = vector.load %arg3[%c0_5, %c0_6] : memref<17x256xbf16, #tpu.memory_space<vmem>>, vector<17x256xbf16>
    %cst = arith.constant dense<0.000000e+00> : vector<8x256xf32>
    %6 = tpu.matmul %4, %5, %cst {dimension_numbers = #tpu.dot_dimension_numbers<[1], [0], [0], [1], [0, 0, 1, 1], [], []>} : vector<8x17xbf16>, vector<17x256xbf16>, vector<8x256xf32> -> vector<8x256xf32>
    %7 = vector.broadcast %1 : vector<1x256xf32> to vector<8x256xf32>
    %8 = arith.addf %6, %7 : vector<8x256xf32>
    %cst_7 = arith.constant 0.000000e+00 : f32
    %9 = vector.broadcast %cst_7 : f32 to vector<8x256xf32>
    %10 = arith.maximumf %8, %9 : vector<8x256xf32>
    %11 = arith.truncf %10 : vector<8x256xf32> to vector<8x256xbf16>
    %c0_8 = arith.constant 0 : index
    %c0_9 = arith.constant 0 : index
    %12 = vector.load %arg4[%c0_8, %c0_9] : memref<256x256xbf16, #tpu.memory_space<vmem>>, vector<256x256xbf16>
    %cst_10 = arith.constant dense<0.000000e+00> : vector<8x256xf32>
    %13 = tpu.matmul %11, %12, %cst_10 {dimension_numbers = #tpu.dot_dimension_numbers<[1], [0], [0], [1], [0, 0, 1, 1], [], []>} : vector<8x256xbf16>, vector<256x256xbf16>, vector<8x256xf32> -> vector<8x256xf32>
    %14 = vector.broadcast %2 : vector<1x256xf32> to vector<8x256xf32>
    %15 = arith.addf %13, %14 : vector<8x256xf32>
    %cst_11 = arith.constant 0.000000e+00 : f32
    %16 = vector.broadcast %cst_11 : f32 to vector<8x256xf32>
    %17 = arith.maximumf %15, %16 : vector<8x256xf32>
    %18 = arith.truncf %17 : vector<8x256xf32> to vector<8x256xbf16>
    %c0_12 = arith.constant 0 : index
    %c0_13 = arith.constant 0 : index
    %19 = vector.load %arg5[%c0_12, %c0_13] : memref<256x128xbf16, #tpu.memory_space<vmem>>, vector<256x128xbf16>
    %cst_14 = arith.constant dense<0.000000e+00> : vector<8x128xf32>
    %20 = tpu.matmul %18, %19, %cst_14 {dimension_numbers = #tpu.dot_dimension_numbers<[1], [0], [0], [1], [0, 0, 1, 1], [], []>} : vector<8x256xbf16>, vector<256x128xbf16>, vector<8x128xf32> -> vector<8x128xf32>
    %21 = vector.broadcast %3 : vector<1x128xf32> to vector<8x128xf32>
    %22 = arith.addf %20, %21 : vector<8x128xf32>
    %c0_15 = arith.constant 0 : index
    %c0_16 = arith.constant 0 : index
    %23 = memref.load %arg1[%c0_15, %c0_16] : memref<1x1xf32, #tpu.memory_space<smem>>
    %24 = math.tanh %22 : vector<8x128xf32>
    %25 = vector.broadcast %23 : f32 to vector<8x128xf32>
    %26 = arith.mulf %25, %24 : vector<8x128xf32>
    %c0_17 = arith.constant 0 : index
    %c0_18 = arith.constant 0 : index
    %27 = vector.load %arg7[%c0_17, %c0_18] : memref<8x128xf32, #tpu.memory_space<vmem>>, vector<8x128xf32>
    tpu.vector_store %arg7[%c0_17, %c0_18], %26 {strides = array<i32>} : memref<8x128xf32, #tpu.memory_space<vmem>>, vector<8x128xf32>,
    return
  }
  func.func @transform_0(%arg0: i32) -> (i32, i32) {
    %c0_i32 = arith.constant 0 : i32
    %c0_i32_0 = arith.constant 0 : i32
    %c0_i32_1 = arith.constant 0 : i32
    return %c0_i32, %c0_i32_0 : i32, i32
  }
  func.func @transform_1(%arg0: i32) -> (i32, i32) {
    %c0_i32 = arith.constant 0 : i32
    %c0_i32_0 = arith.constant 0 : i32
    return %arg0, %c0_i32 : i32, i32
  }
  func.func @transform_2(%arg0: i32) -> (i32, i32) {
    %c0_i32 = arith.constant 0 : i32
    %c0_i32_0 = arith.constant 0 : i32
    %c0_i32_1 = arith.constant 0 : i32
    return %c0_i32, %c0_i32_0 : i32, i32
  }
  func.func @transform_3(%arg0: i32) -> (i32, i32) {
    %c0_i32 = arith.constant 0 : i32
    %c0_i32_0 = arith.constant 0 : i32
    %c0_i32_1 = arith.constant 0 : i32
    return %c0_i32, %c0_i32_0 : i32, i32
  }
  func.func @transform_4(%arg0: i32) -> (i32, i32) {
    %c0_i32 = arith.constant 0 : i32
    %c0_i32_0 = arith.constant 0 : i32
    %c0_i32_1 = arith.constant 0 : i32
    return %c0_i32, %c0_i32_0 : i32, i32
  }
  func.func @transform_5(%arg0: i32) -> (i32, i32) {
    %c0_i32 = arith.constant 0 : i32
    %c0_i32_0 = arith.constant 0 : i32
    %c0_i32_1 = arith.constant 0 : i32
    return %c0_i32, %c0_i32_0 : i32, i32
  }
  func.func @transform_6(%arg0: i32) -> (i32, i32) {
    %c0_i32 = arith.constant 0 : i32
    %c0_i32_0 = arith.constant 0 : i32
    return %arg0, %c0_i32 : i32, i32
  }
}

</mosaic_0001>

<llo_original>
// kernel: tpu_custom_call.1
$region0: #{tpu_custom_call.1}
  #allocation0 [shape = 'u32[]', space=smem, size = 0x4, offset = 0x4, fixed_abs, tag = 'smem constant byte address 0x4 - core index']
  #allocation1 [shape = 'u32[144,128]{1,0:T(1,128)}', space=vmem, size = 0x12000, scoped, tag = 'internal scratch']
  #allocation2 [shape = 'f32[1,1]{1,0:T(1,128)S(6)}', space=smem, size = 0x200, scoped, tag = 'scoped memory for tpu_custom_call.1']
  %s0 = inlined_call_operand.<no memory space> [shape: f32[1,1], index: 0, kind: input, shape index: {}]
  %s1 = inlined_call_operand.hbm [shape: f32[8,17], index: 1, kind: input, shape index: {}]
  %s2 = inlined_call_operand.hbm [shape: bf16[17,256], index: 2, kind: input, shape index: {}]
  %s3 = inlined_call_operand.hbm [shape: bf16[256,256], index: 3, kind: input, shape index: {}]
  %s4 = inlined_call_operand.hbm [shape: bf16[256,128], index: 4, kind: input, shape index: {}]
  %s5 = inlined_call_operand.vmem [shape: f32[3,256], index: 5, kind: input, shape index: {}]
  %s6 = inlined_call_operand.hbm [shape: f32[8,128], index: 6, kind: output, shape index: {}]
  %s7 = sld [smem:[#allocation0]]
  $region50: #{tpu_custom_call.1} parent=0
    _
  %s9 = ssub.s32 1, %s7
  %s10 = scalar_select 0, %s9, %s7
  %11 = sst [smem:[#allocation2]] %s0
  $region1: #{tpu_custom_call.1} parent=0
    #allocation3 [shape = 'u8[4096]{0}', space=vmem, size = 0x1000, scoped, tag = 'input window, operand 1, single buffered']
    #allocation4 [shape = 's32[1]{0}', space=sflag, size = 0x4, scoped, tag = 'scoped memory for tpu_custom_call.1']
    #allocation5 [shape = 's32[1]{0}', space=sflag, size = 0x4, scoped, tag = 'scoped memory for tpu_custom_call.1']
    #allocation6 [shape = 'u8[12288]{0}', space=vmem, size = 0x3000, scoped, tag = 'input window, operand 2, single buffered']
    #allocation7 [shape = 's32[1]{0}', space=sflag, size = 0x4, scoped, tag = 'scoped memory for tpu_custom_call.1']
    #allocation8 [shape = 'u8[131072]{0}', space=vmem, size = 0x20000, scoped, tag = 'input window, operand 3, single buffered']
    #allocation9 [shape = 'u8[65536]{0}', space=vmem, size = 0x10000, scoped, tag = 'input window, operand 4, single buffered']
    #allocation10 [shape = 's32[1]{0}', space=sflag, size = 0x4, scoped, tag = 'scoped memory for tpu_custom_call.1']
    #allocation11 [shape = 'u8[4096]{0}', space=vmem, size = 0x1000, scoped, tag = 'output window, operand 0, single buffered']
    %12 = vsyncpa [#allocation4], 0
    %13 = vsyncpa [#allocation7], 0
    %14 = vsyncpa [#allocation10], 0
    %15 = vsyncpa [#allocation5], 0
    // Predicated region
    $region2: #{tpu_custom_call.1} parent=1 // pred_check
      _
    $region3: #{tpu_custom_call.1} parent=1 // pred_check_branch
      %17 = sbr.rel (0) target = $region5
    $region4: #{tpu_custom_call.1} parent=1 // pred_region
      _
    $region5: #{tpu_custom_call.1} parent=1 // pred_fallthru
      _
    // Predicated region
    $region6: #{tpu_custom_call.1} parent=1 // pred_check
      _
    $region7: #{tpu_custom_call.1} parent=1 // pred_check_branch
      %19 = sbr.rel (0) target = $region9
    $region8: #{tpu_custom_call.1} parent=1 // pred_region
      %s21 = ssub.s32 128, 128
      %22 = vsyncadd [#allocation4], %s21
      %s24 = sshll.u32 [#allocation3], 4
      %s25 = int_to_ptr.vmem [resolvable:$true] %s24
      %27 = dma.hbm_to_vmem [thread:$0]  %s1, 128, %s25, [#allocation4]
    $region9: #{tpu_custom_call.1} parent=1 // pred_fallthru
      _
    // Predicated region
    $region10: #{tpu_custom_call.1} parent=1 // pred_check
      _
    $region11: #{tpu_custom_call.1} parent=1 // pred_check_branch
      %29 = sbr.rel (0) target = $region13
    $region12: #{tpu_custom_call.1} parent=1 // pred_region
      %s31 = ssub.s32 384, 384
      %32 = vsyncadd [#allocation7], %s31
      %s33 = sshll.u32 [#allocation6], 4
      %s34 = int_to_ptr.vmem [resolvable:$true] %s33
      %39 = dma.hbm_to_vmem [thread:$0]  %s2, 384, %s34, [#allocation7], 128, 128, 8
    $region13: #{tpu_custom_call.1} parent=1 // pred_fallthru
      _
    // Predicated region
    $region14: #{tpu_custom_call.1} parent=1 // pred_check
      _
    $region15: #{tpu_custom_call.1} parent=1 // pred_check_branch
      %41 = sbr.rel (0) target = $region17
    $region16: #{tpu_custom_call.1} parent=1 // pred_region
      %s43 = ssub.s32 4096, 4096
      %44 = vsyncadd [#allocation7], %s43
      %s45 = sshll.u32 [#allocation8], 4
      %s46 = int_to_ptr.vmem [resolvable:$true] %s45
      %51 = dma.hbm_to_vmem [thread:$0]  %s3, 4096, %s46, [#allocation7], 128, 128, 8
    $region17: #{tpu_custom_call.1} parent=1 // pred_fallthru
      _
    // Predicated region
    $region18: #{tpu_custom_call.1} parent=1 // pred_check
      _
    $region19: #{tpu_custom_call.1} parent=1 // pred_check_branch
      %53 = sbr.rel (0) target = $region21
    $region20: #{tpu_custom_call.1} parent=1 // pred_region
      %s55 = ssub.s32 2048, 2048
      %56 = vsyncadd [#allocation10], %s55
      %s57 = sshll.u32 [#allocation9], 4
      %s58 = int_to_ptr.vmem [resolvable:$true] %s57
      %63 = dma.hbm_to_vmem [thread:$0]  %s4, 2048, %s58, [#allocation10], 64, 64, 4
    $region21: #{tpu_custom_call.1} parent=1 // pred_fallthru
      _
    // Predicated region
    $region22: #{tpu_custom_call.1} parent=1 // pred_check
      _
    $region23: #{tpu_custom_call.1} parent=1 // pred_check_branch
      %65 = sbr.rel (0) target = $region25
    $region24: #{tpu_custom_call.1} parent=1 // pred_region
      _
    $region25: #{tpu_custom_call.1} parent=1 // pred_fallthru
      _
    // Predicated region
    $region26: #{tpu_custom_call.1} parent=1 // pred_check
      _
    $region27: #{tpu_custom_call.1} parent=1 // pred_check_branch
      %67 = sbr.rel (0) target = $region29
    $region28: #{tpu_custom_call.1} parent=1 // pred_region
      %68 = dma.done [#allocation4], 128
    $region29: #{tpu_custom_call.1} parent=1 // pred_fallthru
      _
    // Predicated region
    $region30: #{tpu_custom_call.1} parent=1 // pred_check
      _
    $region31: #{tpu_custom_call.1} parent=1 // pred_check_branch
      %70 = sbr.rel (0) target = $region33
    $region32: #{tpu_custom_call.1} parent=1 // pred_region
      %71 = dma.done [#allocation7], 384
    $region33: #{tpu_custom_call.1} parent=1 // pred_fallthru
      _
    // Predicated region
    $region34: #{tpu_custom_call.1} parent=1 // pred_check
      _
    $region35: #{tpu_custom_call.1} parent=1 // pred_check_branch
      %73 = sbr.rel (0) target = $region37
    $region36: #{tpu_custom_call.1} parent=1 // pred_region
      %74 = dma.done [#allocation7], 4096
    $region37: #{tpu_custom_call.1} parent=1 // pred_fallthru
      _
    // Predicated region
    $region38: #{tpu_custom_call.1} parent=1 // pred_check
      _
    $region39: #{tpu_custom_call.1} parent=1 // pred_check_branch
      %76 = sbr.rel (0) target = $region41
    $region40: #{tpu_custom_call.1} parent=1 // pred_region
      %77 = dma.done [#allocation10], 2048
    $region41: #{tpu_custom_call.1} parent=1 // pred_fallthru
      _
    %v79 = vld [vmem:[#allocation3] sm:$0xff]
    %v80 = vld [vmem:[%s5] ss:$4 sm:$0x3]
    %s81 = scalar_lea.vmem %s5, 1
    %v82 = vld [vmem:[%s81] ss:$4 sm:$0x3]
    %v83 = vld [vmem:[%s5 + $0x2] sm:$0x1]
    %v84 = vpack.c.bf16 %v79, %v79
    %v85 = vld [vmem:[#allocation6] sm:$0xff]
    %v86 = vld [vmem:[#allocation6 + $0x8] sm:$0xff]
    %v87 = vld [vmem:[#allocation6 + $0x10] sm:$0x11]
    %v89 = vlaneseq
    %v90 = vshrl.u32 %v89, 7
    %v91 = vsub.s32 0, %v90
    %v92 = vrot.slane %v80, %v91
    %v93 = vlaneseq
    %v94 = vshrl.u32 %v93, 7
    %v95 = vsub.s32 1, %v94
    %v96 = vrot.slane %v80, %v95
    %v102 = vunpack.c.l.b16 %v85
    %v103 = vunpack.c.h.b16 %v85
    %v104 = vunpack.c.l.b16 %v86
    %v105 = vunpack.c.h.b16 %v86
    %v106 = vunpack.c.l.b16 %v87
    %v107 = vunpack.c.h.b16 %v87
    %v108 = vpack.c.b16 %v104, %v102
    %v109 = vpack.c.b16 %v105, %v103
    %v110 = vpack.c.b16 %v106, %v106
    %v111 = vpack.c.b16 %v107, %v107
    %vm114 = vcmask 138240
    %v116 = vsel %vm114, %v84, 0
    %vm118 = vcmask 1040384
    %v119 = vsel 0, 4294967295, 65535
    %v120 = vsel %vm118, %v119, 0
    %v122 = vand.u32 %v110, %v120
    %v125 = vand.u32 %v111, %v120
    %127 = vmatprep.subr.bf16.mxu0 %v109
    %128 = vmatpush1.bf16.msra.mxu0 %v108
    %129 = vmatprep.subr.bf16.mxu0 %v125
    %130 = vmatpush1.bf16.msra.mxu0 %v122
    %131 = vmatprep.subr.bf16.mxu0 0
    %132 = vmatpush1.bf16.msra.mxu0 0
    %133 = vmatprep.subr.bf16.mxu0 0
    %134 = vmatpush1.bf16.msra.mxu0 0
    %135 = vmatprep.subr.bf16.mxu0 0
    %136 = vmatpush1.bf16.msra.mxu0 0
    %137 = vmatprep.subr.bf16.mxu0 0
    %138 = vmatpush1.bf16.msra.mxu0 0
    %139 = vmatprep.subr.bf16.mxu0 0
    %140 = vmatpush1.bf16.msra.mxu0 0
    %141 = vmatprep.subr.bf16.mxu0 0
    %142 = vmatpush1.bf16.msra.mxu0 0
    %143 = vmatprep.subr.bf16.mxu0 0
    %144 = vmatpush1.bf16.msra.mxu0 0
    %145 = vmatprep.subr.bf16.mxu0 0
    %146 = vmatpush1.bf16.msra.mxu0 0
    %147 = vmatprep.subr.bf16.mxu0 0
    %148 = vmatpush1.bf16.msra.mxu0 0
    %149 = vmatprep.subr.bf16.mxu0 0
    %150 = vmatpush1.bf16.msra.mxu0 0
    %151 = vmatprep.subr.bf16.mxu0 0
    %152 = vmatpush1.bf16.msra.mxu0 0
    %153 = vmatprep.subr.bf16.mxu0 0
    %154 = vmatpush1.bf16.msra.mxu0 0
    %155 = vmatprep.subr.bf16.mxu0 0
    %156 = vmatpush1.bf16.msra.mxu0 0
    %157 = vmatprep.subr.bf16.mxu0 0
    %158 = vmatpush1.bf16.msra.mxu0 0
    %159 = vmatprep.mubr.bf16.mxu0 0
    %160 = vmatmul.mubr.bf16.gmra.mrb[0].mxu0 %v116
    %v161 = vpop.f32.mrb[0].mxu0
    %v162 = vadd.f32 %v92, %v161
    %v163 = vpop.f32.mrb[0].mxu0
    %v164 = vadd.f32 %v96, %v163
    %v165 = vpop.f32.mrb[0].mxu0
    %v166 = vpop.f32.mrb[0].mxu0
    %167 = vdwg.mxu0
    %v168 = vmax.f32 %v162, 0.0
    %v169 = vmax.f32 %v164, 0.0
    %v170 = vpack.c.bf16 %v168, %v168
    %v171 = vpack.c.bf16 %v169, %v169
    %v172 = vld [vmem:[#allocation8] sm:$0xff]
    %v173 = vld [vmem:[#allocation8 + $0x8] sm:$0xff]
    %v174 = vld [vmem:[#allocation8 + $0x10] sm:$0xff]
    %v175 = vld [vmem:[#allocation8 + $0x18] sm:$0xff]
    %v176 = vld [vmem:[#allocation8 + $0x20] sm:$0xff]
    %v177 = vld [vmem:[#allocation8 + $0x28] sm:$0xff]
    %v178 = vld [vmem:[#allocation8 + $0x30] sm:$0xff]
    %v179 = vld [vmem:[#allocation8 + $0x38] sm:$0xff]
    %v180 = vld [vmem:[#allocation8 + $0x40] sm:$0xff]
    %v181 = vld [vmem:[#allocation8 + $0x48] sm:$0xff]
    %v182 = vld [vmem:[#allocation8 + $0x50] sm:$0xff]
    %v183 = vld [vmem:[#allocation8 + $0x58] sm:$0xff]
    %v184 = vld [vmem:[#allocation8 + $0x60] sm:$0xff]
    %v185 = vld [vmem:[#allocation8 + $0x68] sm:$0xff]
    %v186 = vld [vmem:[#allocation8 + $0x70] sm:$0xff]
    %v187 = vld [vmem:[#allocation8 + $0x78] sm:$0xff]
    %v188 = vld [vmem:[#allocation8 + $0x80] sm:$0xff]
    %v189 = vld [vmem:[#allocation8 + $0x88] sm:$0xff]
    %v190 = vld [vmem:[#allocation8 + $0x90] sm:$0xff]
    %v191 = vld [vmem:[#allocation8 + $0x98] sm:$0xff]
    %v192 = vld [vmem:[#allocation8 + $0xa0] sm:$0xff]
    %v193 = vld [vmem:[#allocation8 + $0xa8] sm:$0xff]
    %v194 = vld [vmem:[#allocation8 + $0xb0] sm:$0xff]
    %v195 = vld [vmem:[#allocation8 + $0xb8] sm:$0xff]
    %v196 = vld [vmem:[#allocation8 + $0xc0] sm:$0xff]
    %v197 = vld [vmem:[#allocation8 + $0xc8] sm:$0xff]
    %v198 = vld [vmem:[#allocation8 + $0xd0] sm:$0xff]
    %v199 = vld [vmem:[#allocation8 + $0xd8] sm:$0xff]
    %v200 = vld [vmem:[#allocation8 + $0xe0] sm:$0xff]
    %v201 = vld [vmem:[#allocation8 + $0xe8] sm:$0xff]
    %v202 = vld [vmem:[#allocation8 + $0xf0] sm:$0xff]
    %v203 = vld [vmem:[#allocation8 + $0xf8] sm:$0xff]
    %v205 = vlaneseq
    %v206 = vshrl.u32 %v205, 7
    %v207 = vsub.s32 0, %v206
    %v208 = vrot.slane %v82, %v207
    %v209 = vlaneseq
    %v210 = vshrl.u32 %v209, 7
    %v211 = vsub.s32 1, %v210
    %v212 = vrot.slane %v82, %v211
    %v247 = vunpack.c.l.b16 %v172
    %v248 = vunpack.c.h.b16 %v172
    %v249 = vunpack.c.l.b16 %v173
    %v250 = vunpack.c.h.b16 %v173
    %v251 = vunpack.c.l.b16 %v174
    %v252 = vunpack.c.h.b16 %v174
    %v253 = vunpack.c.l.b16 %v175
    %v254 = vunpack.c.h.b16 %v175
    %v255 = vunpack.c.l.b16 %v176
    %v256 = vunpack.c.h.b16 %v176
    %v257 = vunpack.c.l.b16 %v177
    %v258 = vunpack.c.h.b16 %v177
    %v259 = vunpack.c.l.b16 %v178
    %v260 = vunpack.c.h.b16 %v178
    %v261 = vunpack.c.l.b16 %v179
    %v262 = vunpack.c.h.b16 %v179
    %v263 = vunpack.c.l.b16 %v180
    %v264 = vunpack.c.h.b16 %v180
    %v265 = vunpack.c.l.b16 %v181
    %v266 = vunpack.c.h.b16 %v181
    %v267 = vunpack.c.l.b16 %v182
    %v268 = vunpack.c.h.b16 %v182
    %v269 = vunpack.c.l.b16 %v183
    %v270 = vunpack.c.h.b16 %v183
    %v271 = vunpack.c.l.b16 %v184
    %v272 = vunpack.c.h.b16 %v184
    %v273 = vunpack.c.l.b16 %v185
    %v274 = vunpack.c.h.b16 %v185
    %v275 = vunpack.c.l.b16 %v186
    %v276 = vunpack.c.h.b16 %v186
    %v277 = vunpack.c.l.b16 %v187
    %v278 = vunpack.c.h.b16 %v187
    %v279 = vunpack.c.l.b16 %v188
    %v280 = vunpack.c.h.b16 %v188
    %v281 = vunpack.c.l.b16 %v189
    %v282 = vunpack.c.h.b16 %v189
    %v283 = vunpack.c.l.b16 %v190
    %v284 = vunpack.c.h.b16 %v190
    %v285 = vunpack.c.l.b16 %v191
    %v286 = vunpack.c.h.b16 %v191
    %v287 = vunpack.c.l.b16 %v192
    %v288 = vunpack.c.h.b16 %v192
    %v289 = vunpack.c.l.b16 %v193
    %v290 = vunpack.c.h.b16 %v193
    %v291 = vunpack.c.l.b16 %v194
    %v292 = vunpack.c.h.b16 %v194
    %v293 = vunpack.c.l.b16 %v195
    %v294 = vunpack.c.h.b16 %v195
    %v295 = vunpack.c.l.b16 %v196
    %v296 = vunpack.c.h.b16 %v196
    %v297 = vunpack.c.l.b16 %v197
    %v298 = vunpack.c.h.b16 %v197
    %v299 = vunpack.c.l.b16 %v198
    %v300 = vunpack.c.h.b16 %v198
    %v301 = vunpack.c.l.b16 %v199
    %v302 = vunpack.c.h.b16 %v199
    %v303 = vunpack.c.l.b16 %v200
    %v304 = vunpack.c.h.b16 %v200
    %v305 = vunpack.c.l.b16 %v201
    %v306 = vunpack.c.h.b16 %v201
    %v307 = vunpack.c.l.b16 %v202
    %v308 = vunpack.c.h.b16 %v202
    %v309 = vunpack.c.l.b16 %v203
    %v310 = vunpack.c.h.b16 %v203
    %v311 = vpack.c.b16 %v249, %v247
    %v312 = vpack.c.b16 %v250, %v248
    %v313 = vpack.c.b16 %v253, %v251
    %v314 = vpack.c.b16 %v254, %v252
    %v315 = vpack.c.b16 %v257, %v255
    %v316 = vpack.c.b16 %v258, %v256
    %v317 = vpack.c.b16 %v261, %v259
    %v318 = vpack.c.b16 %v262, %v260
    %v319 = vpack.c.b16 %v265, %v263
    %v320 = vpack.c.b16 %v266, %v264
    %v321 = vpack.c.b16 %v269, %v267
    %v322 = vpack.c.b16 %v270, %v268
    %v323 = vpack.c.b16 %v273, %v271
    %v324 = vpack.c.b16 %v274, %v272
    %v325 = vpack.c.b16 %v277, %v275
    %v326 = vpack.c.b16 %v278, %v276
    %v327 = vpack.c.b16 %v281, %v279
    %v328 = vpack.c.b16 %v282, %v280
    %v329 = vpack.c.b16 %v285, %v283
    %v330 = vpack.c.b16 %v286, %v284
    %v331 = vpack.c.b16 %v289, %v287
    %v332 = vpack.c.b16 %v290, %v288
    %v333 = vpack.c.b16 %v293, %v291
    %v334 = vpack.c.b16 %v294, %v292
    %v335 = vpack.c.b16 %v297, %v295
    %v336 = vpack.c.b16 %v298, %v296
    %v337 = vpack.c.b16 %v301, %v299
    %v338 = vpack.c.b16 %v302, %v300
    %v339 = vpack.c.b16 %v305, %v303
    %v340 = vpack.c.b16 %v306, %v304
    %v341 = vpack.c.b16 %v309, %v307
    %v342 = vpack.c.b16 %v310, %v308
    %375 = vmatprep.subr.bf16.mxu0 %v312
    %376 = vmatpush1.bf16.msra.mxu0 %v311
    %377 = vmatprep.subr.bf16.mxu0 %v314
    %378 = vmatpush1.bf16.msra.mxu0 %v313
    %379 = vmatprep.subr.bf16.mxu0 %v316
    %380 = vmatpush1.bf16.msra.mxu0 %v315
    %381 = vmatprep.subr.bf16.mxu0 %v318
    %382 = vmatpush1.bf16.msra.mxu0 %v317
    %383 = vmatprep.subr.bf16.mxu0 %v320
    %384 = vmatpush1.bf16.msra.mxu0 %v319
    %385 = vmatprep.subr.bf16.mxu0 %v322
    %386 = vmatpush1.bf16.msra.mxu0 %v321
    %387 = vmatprep.subr.bf16.mxu0 %v324
    %388 = vmatpush1.bf16.msra.mxu0 %v323
    %389 = vmatprep.subr.bf16.mxu0 %v326
    %390 = vmatpush1.bf16.msra.mxu0 %v325
    %391 = vmatprep.subr.bf16.mxu0 %v328
    %392 = vmatpush1.bf16.msra.mxu0 %v327
    %393 = vmatprep.subr.bf16.mxu0 %v330
    %394 = vmatpush1.bf16.msra.mxu0 %v329
    %395 = vmatprep.subr.bf16.mxu0 %v332
    %396 = vmatpush1.bf16.msra.mxu0 %v331
    %397 = vmatprep.subr.bf16.mxu0 %v334
    %398 = vmatpush1.bf16.msra.mxu0 %v333
    %399 = vmatprep.subr.bf16.mxu0 %v336
    %400 = vmatpush1.bf16.msra.mxu0 %v335
    %401 = vmatprep.subr.bf16.mxu0 %v338
    %402 = vmatpush1.bf16.msra.mxu0 %v337
    %403 = vmatprep.subr.bf16.mxu0 %v340
    %404 = vmatpush1.bf16.msra.mxu0 %v339
    %405 = vmatprep.subr.bf16.mxu0 %v342
    %406 = vmatpush1.bf16.msra.mxu0 %v341
    %407 = vmatprep.mubr.bf16.mxu0 %v171
    %408 = vmatmul.mubr.bf16.gmra.mrb[0].mxu0 %v170
    %v409 = vpop.f32.mrb[0].mxu0
    %v410 = vadd.f32 %v208, %v409
    %v411 = vpop.f32.mrb[0].mxu0
    %v412 = vadd.f32 %v212, %v411
    %v413 = vpop.f32.mrb[0].mxu0
    %v414 = vpop.f32.mrb[0].mxu0
    %415 = vdwg.mxu0
    %v416 = vmax.f32 %v410, 0.0
    %v417 = vmax.f32 %v412, 0.0
    %v418 = vpack.c.bf16 %v416, %v416
    %v419 = vpack.c.bf16 %v417, %v417
    %v420 = vld [vmem:[#allocation9] sm:$0xf]
    %v421 = vld [vmem:[#allocation9 + $0x4] sm:$0xf]
    %v422 = vld [vmem:[#allocation9 + $0x8] sm:$0xf]
    %v423 = vld [vmem:[#allocation9 + $0xc] sm:$0xf]
    %v424 = vld [vmem:[#allocation9 + $0x10] sm:$0xf]
    %v425 = vld [vmem:[#allocation9 + $0x14] sm:$0xf]
    %v426 = vld [vmem:[#allocation9 + $0x18] sm:$0xf]
    %v427 = vld [vmem:[#allocation9 + $0x1c] sm:$0xf]
    %v428 = vld [vmem:[#allocation9 + $0x20] sm:$0xf]
    %v429 = vld [vmem:[#allocation9 + $0x24] sm:$0xf]
    %v430 = vld [vmem:[#allocation9 + $0x28] sm:$0xf]
    %v431 = vld [vmem:[#allocation9 + $0x2c] sm:$0xf]
    %v432 = vld [vmem:[#allocation9 + $0x30] sm:$0xf]
    %v433 = vld [vmem:[#allocation9 + $0x34] sm:$0xf]
    %v434 = vld [vmem:[#allocation9 + $0x38] sm:$0xf]
    %v435 = vld [vmem:[#allocation9 + $0x3c] sm:$0xf]
    %v436 = vld [vmem:[#allocation9 + $0x40] sm:$0xf]
    %v437 = vld [vmem:[#allocation9 + $0x44] sm:$0xf]
    %v438 = vld [vmem:[#allocation9 + $0x48] sm:$0xf]
    %v439 = vld [vmem:[#allocation9 + $0x4c] sm:$0xf]
    %v440 = vld [vmem:[#allocation9 + $0x50] sm:$0xf]
    %v441 = vld [vmem:[#allocation9 + $0x54] sm:$0xf]
    %v442 = vld [vmem:[#allocation9 + $0x58] sm:$0xf]
    %v443 = vld [vmem:[#allocation9 + $0x5c] sm:$0xf]
    %v444 = vld [vmem:[#allocation9 + $0x60] sm:$0xf]
    %v445 = vld [vmem:[#allocation9 + $0x64] sm:$0xf]
    %v446 = vld [vmem:[#allocation9 + $0x68] sm:$0xf]
    %v447 = vld [vmem:[#allocation9 + $0x6c] sm:$0xf]
    %v448 = vld [vmem:[#allocation9 + $0x70] sm:$0xf]
    %v449 = vld [vmem:[#allocation9 + $0x74] sm:$0xf]
    %v450 = vld [vmem:[#allocation9 + $0x78] sm:$0xf]
    %v451 = vld [vmem:[#allocation9 + $0x7c] sm:$0xf]
    %v452 = vlaneseq
    %v453 = vshrl.u32 %v452, 7
    %v454 = vsub.s32 0, %v453
    %v455 = vrot.slane %v83, %v454
    %v488 = vunpack.c.l.b16 %v420
    %v489 = vunpack.c.l.b16 %v421
    %v490 = vunpack.c.l.b16 %v422
    %v491 = vunpack.c.l.b16 %v423
    %v492 = vunpack.c.l.b16 %v424
    %v493 = vunpack.c.l.b16 %v425
    %v494 = vunpack.c.l.b16 %v426
    %v495 = vunpack.c.l.b16 %v427
    %v496 = vunpack.c.l.b16 %v428
    %v497 = vunpack.c.l.b16 %v429
    %v498 = vunpack.c.l.b16 %v430
    %v499 = vunpack.c.l.b16 %v431
    %v500 = vunpack.c.l.b16 %v432
    %v501 = vunpack.c.l.b16 %v433
    %v502 = vunpack.c.l.b16 %v434
    %v503 = vunpack.c.l.b16 %v435
    %v504 = vunpack.c.l.b16 %v436
    %v505 = vunpack.c.l.b16 %v437
    %v506 = vunpack.c.l.b16 %v438
    %v507 = vunpack.c.l.b16 %v439
    %v508 = vunpack.c.l.b16 %v440
    %v509 = vunpack.c.l.b16 %v441
    %v510 = vunpack.c.l.b16 %v442
    %v511 = vunpack.c.l.b16 %v443
    %v512 = vunpack.c.l.b16 %v444
    %v513 = vunpack.c.l.b16 %v445
    %v514 = vunpack.c.l.b16 %v446
    %v515 = vunpack.c.l.b16 %v447
    %v516 = vunpack.c.l.b16 %v448
    %v517 = vunpack.c.l.b16 %v449
    %v518 = vunpack.c.l.b16 %v450
    %v519 = vunpack.c.l.b16 %v451
    %v520 = vpack.c.b16 %v489, %v488
    %v521 = vpack.c.b16 %v491, %v490
    %v522 = vpack.c.b16 %v493, %v492
    %v523 = vpack.c.b16 %v495, %v494
    %v524 = vpack.c.b16 %v497, %v496
    %v525 = vpack.c.b16 %v499, %v498
    %v526 = vpack.c.b16 %v501, %v500
    %v527 = vpack.c.b16 %v503, %v502
    %v528 = vpack.c.b16 %v505, %v504
    %v529 = vpack.c.b16 %v507, %v506
    %v530 = vpack.c.b16 %v509, %v508
    %v531 = vpack.c.b16 %v511, %v510
    %v532 = vpack.c.b16 %v513, %v512
    %v533 = vpack.c.b16 %v515, %v514
    %v534 = vpack.c.b16 %v517, %v516
    %v535 = vpack.c.b16 %v519, %v518
    %552 = vmatprep.subr.bf16.mxu0 0
    %553 = vmatpush1.bf16.msra.mxu0 %v520
    %554 = vmatprep.subr.bf16.mxu0 0
    %555 = vmatpush1.bf16.msra.mxu0 %v521
    %556 = vmatprep.subr.bf16.mxu0 0
    %557 = vmatpush1.bf16.msra.mxu0 %v522
    %558 = vmatprep.subr.bf16.mxu0 0
    %559 = vmatpush1.bf16.msra.mxu0 %v523
    %560 = vmatprep.subr.bf16.mxu0 0
    %561 = vmatpush1.bf16.msra.mxu0 %v524
    %562 = vmatprep.subr.bf16.mxu0 0
    %563 = vmatpush1.bf16.msra.mxu0 %v525
    %564 = vmatprep.subr.bf16.mxu0 0
    %565 = vmatpush1.bf16.msra.mxu0 %v526
    %566 = vmatprep.subr.bf16.mxu0 0
    %567 = vmatpush1.bf16.msra.mxu0 %v527
    %568 = vmatprep.subr.bf16.mxu0 0
    %569 = vmatpush1.bf16.msra.mxu0 %v528
    %570 = vmatprep.subr.bf16.mxu0 0
    %571 = vmatpush1.bf16.msra.mxu0 %v529
    %572 = vmatprep.subr.bf16.mxu0 0
    %573 = vmatpush1.bf16.msra.mxu0 %v530
    %574 = vmatprep.subr.bf16.mxu0 0
    %575 = vmatpush1.bf16.msra.mxu0 %v531
    %576 = vmatprep.subr.bf16.mxu0 0
    %577 = vmatpush1.bf16.msra.mxu0 %v532
    %578 = vmatprep.subr.bf16.mxu0 0
    %579 = vmatpush1.bf16.msra.mxu0 %v533
    %580 = vmatprep.subr.bf16.mxu0 0
    %581 = vmatpush1.bf16.msra.mxu0 %v534
    %582 = vmatprep.subr.bf16.mxu0 0
    %583 = vmatpush1.bf16.msra.mxu0 %v535
    %584 = vmatprep.mubr.bf16.mxu0 %v419
    %585 = vmatmul.mubr.bf16.gmra.mrb[0].mxu0 %v418
    %v586 = vpop.f32.mrb[0].mxu0
    %v587 = vadd.f32 %v455, %v586
    %v588 = vpop.f32.mrb[0].mxu0
    %v589 = vpop.f32.mrb[0].mxu0
    %v590 = vpop.f32.mrb[0].mxu0
    %591 = vdwg.mxu0
    %s592 = sld [smem:[#allocation2]]
    %v593 = vtanh.pop %v587
    %v594 = vstv %s592
    %v595 = vmul.f32 %v594, %v593
    %596 = vst [vmem:[#allocation11] sm:$0xff] %v595
    // Predicated region
    $region42: #{tpu_custom_call.1} parent=1 // pred_check
      _
    $region43: #{tpu_custom_call.1} parent=1 // pred_check_branch
      %598 = sbr.rel (0) target = $region45
    $region44: #{tpu_custom_call.1} parent=1 // pred_region
      %s600 = ssub.s32 128, 128
      %601 = vsyncadd [#allocation5], %s600
      %s603 = sshll.u32 [#allocation11], 4
      %s604 = int_to_ptr.vmem [resolvable:$true] %s603
      %606 = dma.vmem_to_hbm [thread:$0]  %s604, 128, %s6, [#allocation5]
    $region45: #{tpu_custom_call.1} parent=1 // pred_fallthru
      _
    // Predicated region
    $region46: #{tpu_custom_call.1} parent=1 // pred_check
      _
    $region47: #{tpu_custom_call.1} parent=1 // pred_check_branch
      %608 = sbr.rel (0) target = $region49
    $region48: #{tpu_custom_call.1} parent=1 // pred_region
      %609 = dma.done [#allocation5], 128
    $region49: #{tpu_custom_call.1} parent=1 // pred_fallthru
      _
    %610 = vsyncpa [#allocation4], 1
    %611 = vsyncpa [#allocation7], 1
    %612 = vsyncpa [#allocation10], 1
    %613 = vsyncpa [#allocation5], 1

</llo_original>
